<compile_context>
chip_gen: v5e
topology: v5e:2x2
jax: 0.10.0
libtpu: 0.0.40
codegen_flags: <defaults>
</compile_context>

<pallas_src>
import jax
import jax.numpy as jnp
from jax import lax
from jax.experimental import pallas as pl
from jax.experimental.pallas import tpu as pltpu


def _round_up(a, m):
    return ((a + m - 1) // m) * m


def _cdiv(a, b):
    return (a + b - 1) // b


# --------------------------------------------------------------------------- #
# Kernel
# --------------------------------------------------------------------------- #
def simplenet_kernel(x_ref,                 # (Bt, In)  input tile, natural layout
                     w1_ref, b1_ref,        # (H, In),  (H, 1)
                     w2_ref, b2_ref,        # (4H, H),  (4H, 1)
                     w34_ref,               # (4H, 1)   f32  = (w4 @ W3) column
                     o_ref):                # (1, Bt)   f32, lane-dense
    # Cast the streamed x tile to the matmul dtype on the VPU; the wrapper never
    # rewrites x in HBM.
    x = x_ref[...].astype(w1_ref.dtype)                          # (Bt, In)

    # linear_1: contract the feature axes of W1 (H, In) and x (Bt, In)
    # (same dimension numbers as q @ k^T) -> features-major h (H, Bt), f32 acc.
    h = lax.dot_general(w1_ref[...], x, (((1,), (1,)), ((), ())),
                        preferred_element_type=jnp.float32)
    h = h + b1_ref[...]                                           # (H, Bt) f32

    # block_1.linear + ReLU: (4H, H) @ (H, Bt) -> (4H, Bt), f32 bias/ReLU epilogue.
    h2 = jnp.dot(w2_ref[...], h.astype(w2_ref.dtype),
                 preferred_element_type=jnp.float32)
    h2 = jnp.maximum(h2 + b2_ref[...], 0.0)                       # (4H, Bt) f32

    # block_1.output fused with linear_2 (exact algebra, no nonlinearity between):
    #   y = w4 @ (W3 @ h2 + b3) + b4 = (w4 @ W3) @ h2 + (w4 @ b3 + b4)
    # VPU multiply + sublane reduce keeps the output lane-dense; the scalar bias
    # (w4 @ b3 + b4) is added in the wrapper.
    y = jnp.sum(h2 * w34_ref[...], axis=0, keepdims=True)         # (1, Bt) f32
    o_ref[...] = y.astype(o_ref.dtype)


# --------------------------------------------------------------------------- #
# Wrapper
# --------------------------------------------------------------------------- #
def _const_spec(shape, single_buffer):
    """BlockSpec for a grid-invariant operand (weights/biases).  When supported,
    request single buffering (pl.Buffered(1)) so resident weight VMEM is 1x
    instead of the default 2x."""
    if single_buffer and hasattr(pl, "Buffered"):
        try:
            return pl.BlockSpec(shape, lambda i: (0, 0),
                                pipeline_mode=pl.Buffered(1))
        except TypeError:                     # older jax: no pipeline_mode kwarg
            pass
    return pl.BlockSpec(shape, lambda i: (0, 0))


def simplenet_forward(x, params, *, block_b=None, matmul_dtype=jnp.bfloat16):
    """SimpleNetV1 forward.  x: (B, In); params in torch layout
    (W: (out, in), b: (out,)).  Returns (B,) float32."""
    (w1, b1), (w2, b2), (w3, b3), (w4, b4) = params
    B, In = x.shape
    H = w1.shape[0]
    H4 = w2.shape[0]
    md = jnp.dtype(matmul_dtype)
    itm = md.itemsize
    x_itm = jnp.dtype(x.dtype).itemsize

    # --- fold linear_2 into block_1.output (exact algebra, f32, HIGHEST prec) ---
    hi = lax.Precision.HIGHEST
    w3f = jnp.asarray(w3, jnp.float32)
    w4f = jnp.asarray(w4, jnp.float32).reshape(1, H)
    w34 = jnp.dot(w4f, w3f, precision=hi).reshape(H4, 1)             # (4H, 1)
    b34 = (jnp.dot(w4f, jnp.asarray(b3, jnp.float32).reshape(H, 1),
                   precision=hi).reshape(())
           + jnp.asarray(b4, jnp.float32).reshape(()))

    # --- weights / biases in kernel layout (torch (out, in) used directly) ------
    w1m = jnp.asarray(w1, md)                                         # (H, In)
    w2m = jnp.asarray(w2, md)                                         # (4H, H)
    b1c = jnp.asarray(b1, jnp.float32).reshape(H, 1)
    b2c = jnp.asarray(b2, jnp.float32).reshape(H4, 1)

    # --- generation-aware VMEM budget --------------------------------------------
    try:
        phys_vmem = int(pltpu.get_tpu_info().vmem_capacity_bytes)
    except Exception:
        phys_vmem = 64 << 20              # conservative (v7x-sized) fallback
    vmem_cap = int(phys_vmem * 0.80)      # ~51 MiB on v7x, ~102 MiB on v5e/v6e

    weight_bytes = itm * (H * In + H4 * H) + 4 * (H + H4 + H4)
    # Budget weights 2x (covers the fallback path without Buffered(1)).
    tile_budget = max(4 << 20, vmem_cap - 2 * weight_bytes)

    # --- adaptive, 128-aligned batch tile -----------------------------------------
    if block_b is None:                   # bigger tiles when intermediates are small
        block_b = 2048 if H <= 256 else (1024 if H <= 1024 else 512)

    def tile_bytes(b):                    # per-tile working set (streams + f32 temps)
        stream = 2 * b * (In * x_itm + 4)       # double-buffered x tile + out row
        inter = 4 * b * (2 * H + 2 * H4 + 1)    # f32 intermediates (h, cast, h2, ...)
        return stream + inter

    B128 = _round_up(B, 128)
    bb = min(_round_up(max(block_b, 128), 128), B128)
    # >= 4 (>= 2) grid steps when the batch allows: DMA/compute overlap and both
    # v7x TensorCores get work on the "parallel" batch axis.
    if B128 >= 4 * 128:
        bb = min(bb, max(128, _round_up(_cdiv(B128, 4), 128)))
    elif B128 >= 2 * 128:
        bb = min(bb, max(128, _round_up(_cdiv(B128, 2), 128)))
    while bb > 128 and tile_bytes(bb) > tile_budget:
        bb = max(128, _round_up(bb // 2, 128))
    n_tiles = _cdiv(B128, bb)
    if n_tiles > 1 and n_tiles % 2 == 1 and bb > 128:  # prefer even tile counts (v7x)
        bb2 = max(128, _round_up(_cdiv(B128, n_tiles + 1), 128))
        if _cdiv(B128, bb2) % 2 == 0 and tile_bytes(bb2) <= tile_budget:
            bb = bb2
    num_tiles = _cdiv(B128, bb)
    B_pad = num_tiles * bb

    x_in = x if B_pad == B else jnp.pad(x, ((0, B_pad - B), (0, 0)))

    flops = 2 * B_pad * (In * H + H * H4) + 3 * B_pad * H4
    bytes_accessed = int(B_pad * In * x_itm + weight_bytes + B_pad * 4)

    const_shapes = [(H, In), (H, 1), (H4, H), (H4, 1), (H4, 1)]

    def build(single_buffer):
        return pl.pallas_call(
            simplenet_kernel,
            out_shape=jax.ShapeDtypeStruct((1, B_pad), jnp.float32),
            grid_spec=pltpu.PrefetchScalarGridSpec(
                num_scalar_prefetch=0,
                grid=(num_tiles,),
                in_specs=([pl.BlockSpec((bb, In), lambda i: (i, 0))]      # x tile
                          + [_const_spec(s, single_buffer) for s in const_shapes]),
                out_specs=pl.BlockSpec((1, bb), lambda i: (0, i)),        # lane-dense
            ),
            compiler_params=pltpu.CompilerParams(
                dimension_semantics=("parallel",),
                vmem_limit_bytes=vmem_cap),
            cost_estimate=pl.CostEstimate(flops=flops, transcendentals=0,
                                          bytes_accessed=bytes_accessed),
        )

    args = (x_in, w1m, b1c, w2m, b2c, w34)
    try:
        out = build(single_buffer=True)(*args)
    except Exception:
        # Fallback: default double-buffered weight specs if this jax build rejects
        # pipeline_mode=pl.Buffered(1) at lowering time.
        out = build(single_buffer=False)(*args)

    # squeeze(-1), add the folded scalar bias, drop batch padding.
    return out[0, :B] + b34


# --------------------------------------------------------------------------- #
# Params / reference / test
# --------------------------------------------------------------------------- #
def init_params(key, input_size, hidden_size):
    """Deterministic synthetic init with PyTorch nn.Linear shapes: W (out, in), b (out,)."""
    ks = jax.random.split(key, 8)

    def linear(kw, kb, fan_in, fan_out):
        bound = 1.0 / (fan_in ** 0.5)
        w = jax.random.uniform(kw, (fan_out, fan_in), jnp.float32, -bound, bound)
        b = jax.random.uniform(kb, (fan_out,), jnp.float32, -bound, bound)
        return w, b

    p1 = linear(ks[0], ks[1], input_size, hidden_size)           # linear_1
    p2 = linear(ks[2], ks[3], hidden_size, hidden_size * 4)      # block_1.linear
    p3 = linear(ks[4], ks[5], hidden_size * 4, hidden_size)      # block_1.output
    p4 = linear(ks[6], ks[7], hidden_size, 1)                    # linear_2
    return (p1, p2, p3, p4)


def reference_forward(x, params):
    """Pure-JAX reference of the PyTorch module (HIGHEST-precision matmuls so
    the comparison target is true f32 math, not the TPU default bf16 pass)."""
    hi = lax.Precision.HIGHEST
    (w1, b1), (w2, b2), (w3, b3), (w4, b4) = params
    h = jnp.dot(x, w1.T, precision=hi) + b1
    h = jnp.maximum(jnp.dot(h, w2.T, precision=hi) + b2, 0.0)
    h = jnp.dot(h, w3.T, precision=hi) + b3
    return (jnp.dot(h, w4.T, precision=hi) + b4)[:, 0]


if __name__ == "__main__":
    key = jax.random.PRNGKey(0)
    k_in, k_in2, k_p = jax.random.split(key, 3)

    batch, input_size, hidden_size = 8, 16, 32
    x = jax.random.normal(k_in, (batch, input_size), jnp.float32)
    params = init_params(k_p, input_size, hidden_size)
    y_ref = reference_forward(x, params)

    # f32 MXU path (multi-pass f32): tight-ish check (tolerance allows for TPU
    # matmul rounding and the exact linear_2/block.output fold reassociation).
    y32 = jax.block_until_ready(
        simplenet_forward(x, params, matmul_dtype=jnp.float32))
    assert y32.shape == (batch,)
    assert jnp.allclose(y32, y_ref, atol=1e-2, rtol=1e-2), (y32, y_ref)

    # bf16 MXU path (default; f32 accumulation + f32 epilogue): looser check.
    y16 = jax.block_until_ready(simplenet_forward(x, params))
    assert y16.shape == (batch,)
    assert jnp.allclose(y16, y_ref, atol=5e-2, rtol=5e-2), (y16, y_ref)

    # Multi-tile / ragged-batch path (>= 2 grid steps, padding sliced off).
    batch2 = 300
    x2 = jax.random.normal(k_in2, (batch2, input_size), jnp.float32)
    y2_ref = reference_forward(x2, params)
    y2 = jax.block_until_ready(simplenet_forward(x2, params))
    assert y2.shape == (batch2,)
    assert jnp.allclose(y2, y2_ref, atol=5e-2, rtol=5e-2), (y2, y2_ref)

    print("KERNEL_OK")
</pallas_src>

<mosaic_0001>
module attributes {stable_mosaic.version = 11 : i64} {
  func.func @simplenet_kernel(%arg0: i32, %arg1: memref<128x16xf32, #tpu.memory_space<vmem>>, %arg2: memref<32x16xf32, #tpu.memory_space<vmem>>, %arg3: memref<32x1xf32, #tpu.memory_space<vmem>>, %arg4: memref<128x32xf32, #tpu.memory_space<vmem>>, %arg5: memref<128x1xf32, #tpu.memory_space<vmem>>, %arg6: memref<128x1xf32, #tpu.memory_space<vmem>>, %arg7: memref<1x128xf32, #tpu.memory_space<vmem>>) attributes {dimension_semantics = [#tpu.dimension_semantics<parallel>], iteration_bounds = array<i64: 1>, scalar_prefetch = 0 : i64, scratch_operands = 0 : i64, tpu.core_type = #tpu.core_type<tc>, window_params = [{transform_indices = @transform_0, window_bounds = array<i64: 128, 16>}, {pipeline_mode = #tpu.pipeline_mode<synchronous>, transform_indices = @transform_1, window_bounds = array<i64: 32, 16>}, {pipeline_mode = #tpu.pipeline_mode<synchronous>, transform_indices = @transform_2, window_bounds = array<i64: 32, 1>}, {pipeline_mode = #tpu.pipeline_mode<synchronous>, transform_indices = @transform_3, window_bounds = array<i64: 128, 32>}, {pipeline_mode = #tpu.pipeline_mode<synchronous>, transform_indices = @transform_4, window_bounds = array<i64: 128, 1>}, {pipeline_mode = #tpu.pipeline_mode<synchronous>, transform_indices = @transform_5, window_bounds = array<i64: 128, 1>}, {transform_indices = @transform_6, window_bounds = array<i64: 1, 128>}]} {
    %c0 = arith.constant 0 : index
    %c0_0 = arith.constant 0 : index
    %0 = vector.load %arg1[%c0, %c0_0] : memref<128x16xf32, #tpu.memory_space<vmem>>, vector<128x16xf32>
    %c0_1 = arith.constant 0 : index
    %c0_2 = arith.constant 0 : index
    %1 = vector.load %arg2[%c0_1, %c0_2] : memref<32x16xf32, #tpu.memory_space<vmem>>, vector<32x16xf32>
    %cst = arith.constant dense<0.000000e+00> : vector<32x128xf32>
    %2 = tpu.matmul %1, %0, %cst {dimension_numbers = #tpu.dot_dimension_numbers<[1], [1], [0], [0], [0, 0, 1, 0], [], []>} : vector<32x16xf32>, vector<128x16xf32>, vector<32x128xf32> -> vector<32x128xf32>
    %c0_3 = arith.constant 0 : index
    %c0_4 = arith.constant 0 : index
    %3 = vector.load %arg3[%c0_3, %c0_4] : memref<32x1xf32, #tpu.memory_space<vmem>>, vector<32x1xf32>
    %4 = vector.broadcast %3 : vector<32x1xf32> to vector<32x128xf32>
    %5 = arith.addf %2, %4 : vector<32x128xf32>
    %c0_5 = arith.constant 0 : index
    %c0_6 = arith.constant 0 : index
    %6 = vector.load %arg4[%c0_5, %c0_6] : memref<128x32xf32, #tpu.memory_space<vmem>>, vector<128x32xf32>
    %cst_7 = arith.constant dense<0.000000e+00> : vector<128x128xf32>
    %7 = tpu.matmul %6, %5, %cst_7 {dimension_numbers = #tpu.dot_dimension_numbers<[1], [0], [0], [1], [0, 0, 1, 1], [], []>} : vector<128x32xf32>, vector<32x128xf32>, vector<128x128xf32> -> vector<128x128xf32>
    %c0_8 = arith.constant 0 : index
    %c0_9 = arith.constant 0 : index
    %8 = vector.load %arg5[%c0_8, %c0_9] : memref<128x1xf32, #tpu.memory_space<vmem>>, vector<128x1xf32>
    %9 = vector.broadcast %8 : vector<128x1xf32> to vector<128x128xf32>
    %10 = arith.addf %7, %9 : vector<128x128xf32>
    %cst_10 = arith.constant 0.000000e+00 : f32
    %11 = vector.broadcast %cst_10 : f32 to vector<128x128xf32>
    %12 = arith.maximumf %10, %11 : vector<128x128xf32>
    %c0_11 = arith.constant 0 : index
    %c0_12 = arith.constant 0 : index
    %13 = vector.load %arg6[%c0_11, %c0_12] : memref<128x1xf32, #tpu.memory_space<vmem>>, vector<128x1xf32>
    %14 = vector.broadcast %13 : vector<128x1xf32> to vector<128x128xf32>
    %15 = arith.mulf %12, %14 : vector<128x128xf32>
    %cst_13 = arith.constant dense<0.000000e+00> : vector<128xf32>
    %16 = vector.multi_reduction <add>, %15, %cst_13 [0] : vector<128x128xf32> to vector<128xf32>
    %17 = vector.shape_cast %16 : vector<128xf32> to vector<1x128xf32>
    %c0_14 = arith.constant 0 : index
    %c0_15 = arith.constant 0 : index
    %18 = vector.load %arg7[%c0_14, %c0_15] : memref<1x128xf32, #tpu.memory_space<vmem>>, vector<1x128xf32>
    tpu.vector_store %arg7[%c0_14, %c0_15], %17 {strides = array<i32>} : memref<1x128xf32, #tpu.memory_space<vmem>>, vector<1x128xf32>,
    return
  }
  func.func @transform_0(%arg0: i32) -> (i32, i32) {
    %c0_i32 = arith.constant 0 : i32
    %c0_i32_0 = arith.constant 0 : i32
    return %arg0, %c0_i32 : i32, i32
  }
  func.func @transform_1(%arg0: i32) -> (i32, i32) {
    %c0_i32 = arith.constant 0 : i32
    %c0_i32_0 = arith.constant 0 : i32
    %c0_i32_1 = arith.constant 0 : i32
    return %c0_i32, %c0_i32_0 : i32, i32
  }
  func.func @transform_2(%arg0: i32) -> (i32, i32) {
    %c0_i32 = arith.constant 0 : i32
    %c0_i32_0 = arith.constant 0 : i32
    %c0_i32_1 = arith.constant 0 : i32
    return %c0_i32, %c0_i32_0 : i32, i32
  }
  func.func @transform_3(%arg0: i32) -> (i32, i32) {
    %c0_i32 = arith.constant 0 : i32
    %c0_i32_0 = arith.constant 0 : i32
    %c0_i32_1 = arith.constant 0 : i32
    return %c0_i32, %c0_i32_0 : i32, i32
  }
  func.func @transform_4(%arg0: i32) -> (i32, i32) {
    %c0_i32 = arith.constant 0 : i32
    %c0_i32_0 = arith.constant 0 : i32
    %c0_i32_1 = arith.constant 0 : i32
    return %c0_i32, %c0_i32_0 : i32, i32
  }
  func.func @transform_5(%arg0: i32) -> (i32, i32) {
    %c0_i32 = arith.constant 0 : i32
    %c0_i32_0 = arith.constant 0 : i32
    %c0_i32_1 = arith.constant 0 : i32
    return %c0_i32, %c0_i32_0 : i32, i32
  }
  func.func @transform_6(%arg0: i32) -> (i32, i32) {
    %c0_i32 = arith.constant 0 : i32
    %c0_i32_0 = arith.constant 0 : i32
    return %c0_i32, %arg0 : i32, i32
  }
}

module attributes {stable_mosaic.version = 11 : i64} {
  func.func @simplenet_kernel(%arg0: i32, %arg1: memref<128x16xf32, #tpu.memory_space<vmem>>, %arg2: memref<32x16xf32, #tpu.memory_space<vmem>>, %arg3: memref<32x1xf32, #tpu.memory_space<vmem>>, %arg4: memref<128x32xf32, #tpu.memory_space<vmem>>, %arg5: memref<128x1xf32, #tpu.memory_space<vmem>>, %arg6: memref<128x1xf32, #tpu.memory_space<vmem>>, %arg7: memref<1x128xf32, #tpu.memory_space<vmem>>) attributes {dimension_semantics = [#tpu.dimension_semantics<parallel>], iteration_bounds = array<i64: 1>, scalar_prefetch = 0 : i64, scratch_operands = 0 : i64, tpu.core_type = #tpu.core_type<tc>, window_params = [{transform_indices = @transform_0, window_bounds = array<i64: 128, 16>}, {pipeline_mode = #tpu.pipeline_mode<synchronous>, transform_indices = @transform_1, window_bounds = array<i64: 32, 16>}, {pipeline_mode = #tpu.pipeline_mode<synchronous>, transform_indices = @transform_2, window_bounds = array<i64: 32, 1>}, {pipeline_mode = #tpu.pipeline_mode<synchronous>, transform_indices = @transform_3, window_bounds = array<i64: 128, 32>}, {pipeline_mode = #tpu.pipeline_mode<synchronous>, transform_indices = @transform_4, window_bounds = array<i64: 128, 1>}, {pipeline_mode = #tpu.pipeline_mode<synchronous>, transform_indices = @transform_5, window_bounds = array<i64: 128, 1>}, {transform_indices = @transform_6, window_bounds = array<i64: 1, 128>}]} {
    %c0 = arith.constant 0 : index
    %c0_0 = arith.constant 0 : index
    %0 = vector.load %arg1[%c0, %c0_0] : memref<128x16xf32, #tpu.memory_space<vmem>>, vector<128x16xf32>
    %c0_1 = arith.constant 0 : index
    %c0_2 = arith.constant 0 : index
    %1 = vector.load %arg2[%c0_1, %c0_2] : memref<32x16xf32, #tpu.memory_space<vmem>>, vector<32x16xf32>
    %cst = arith.constant dense<0.000000e+00> : vector<32x128xf32>
    %2 = tpu.matmul %1, %0, %cst {dimension_numbers = #tpu.dot_dimension_numbers<[1], [1], [0], [0], [0, 0, 1, 0], [], []>} : vector<32x16xf32>, vector<128x16xf32>, vector<32x128xf32> -> vector<32x128xf32>
    %c0_3 = arith.constant 0 : index
    %c0_4 = arith.constant 0 : index
    %3 = vector.load %arg3[%c0_3, %c0_4] : memref<32x1xf32, #tpu.memory_space<vmem>>, vector<32x1xf32>
    %4 = vector.broadcast %3 : vector<32x1xf32> to vector<32x128xf32>
    %5 = arith.addf %2, %4 : vector<32x128xf32>
    %c0_5 = arith.constant 0 : index
    %c0_6 = arith.constant 0 : index
    %6 = vector.load %arg4[%c0_5, %c0_6] : memref<128x32xf32, #tpu.memory_space<vmem>>, vector<128x32xf32>
    %cst_7 = arith.constant dense<0.000000e+00> : vector<128x128xf32>
    %7 = tpu.matmul %6, %5, %cst_7 {dimension_numbers = #tpu.dot_dimension_numbers<[1], [0], [0], [1], [0, 0, 1, 1], [], []>} : vector<128x32xf32>, vector<32x128xf32>, vector<128x128xf32> -> vector<128x128xf32>
    %c0_8 = arith.constant 0 : index
    %c0_9 = arith.constant 0 : index
    %8 = vector.load %arg5[%c0_8, %c0_9] : memref<128x1xf32, #tpu.memory_space<vmem>>, vector<128x1xf32>
    %9 = vector.broadcast %8 : vector<128x1xf32> to vector<128x128xf32>
    %10 = arith.addf %7, %9 : vector<128x128xf32>
    %cst_10 = arith.constant 0.000000e+00 : f32
    %11 = vector.broadcast %cst_10 : f32 to vector<128x128xf32>
    %12 = arith.maximumf %10, %11 : vector<128x128xf32>
    %c0_11 = arith.constant 0 : index
    %c0_12 = arith.constant 0 : index
    %13 = vector.load %arg6[%c0_11, %c0_12] : memref<128x1xf32, #tpu.memory_space<vmem>>, vector<128x1xf32>
    %14 = vector.broadcast %13 : vector<128x1xf32> to vector<128x128xf32>
    %15 = arith.mulf %12, %14 : vector<128x128xf32>
    %cst_13 = arith.constant dense<0.000000e+00> : vector<128xf32>
    %16 = vector.multi_reduction <add>, %15, %cst_13 [0] : vector<128x128xf32> to vector<128xf32>
    %17 = vector.shape_cast %16 : vector<128xf32> to vector<1x128xf32>
    %c0_14 = arith.constant 0 : index
    %c0_15 = arith.constant 0 : index
    %18 = vector.load %arg7[%c0_14, %c0_15] : memref<1x128xf32, #tpu.memory_space<vmem>>, vector<1x128xf32>
    tpu.vector_store %arg7[%c0_14, %c0_15], %17 {strides = array<i32>} : memref<1x128xf32, #tpu.memory_space<vmem>>, vector<1x128xf32>,
    return
  }
  func.func @transform_0(%arg0: i32) -> (i32, i32) {
    %c0_i32 = arith.constant 0 : i32
    %c0_i32_0 = arith.constant 0 : i32
    return %arg0, %c0_i32 : i32, i32
  }
  func.func @transform_1(%arg0: i32) -> (i32, i32) {
    %c0_i32 = arith.constant 0 : i32
    %c0_i32_0 = arith.constant 0 : i32
    %c0_i32_1 = arith.constant 0 : i32
    return %c0_i32, %c0_i32_0 : i32, i32
  }
  func.func @transform_2(%arg0: i32) -> (i32, i32) {
    %c0_i32 = arith.constant 0 : i32
    %c0_i32_0 = arith.constant 0 : i32
    %c0_i32_1 = arith.constant 0 : i32
    return %c0_i32, %c0_i32_0 : i32, i32
  }
  func.func @transform_3(%arg0: i32) -> (i32, i32) {
    %c0_i32 = arith.constant 0 : i32
    %c0_i32_0 = arith.constant 0 : i32
    %c0_i32_1 = arith.constant 0 : i32
    return %c0_i32, %c0_i32_0 : i32, i32
  }
  func.func @transform_4(%arg0: i32) -> (i32, i32) {
    %c0_i32 = arith.constant 0 : i32
    %c0_i32_0 = arith.constant 0 : i32
    %c0_i32_1 = arith.constant 0 : i32
    return %c0_i32, %c0_i32_0 : i32, i32
  }
  func.func @transform_5(%arg0: i32) -> (i32, i32) {
    %c0_i32 = arith.constant 0 : i32
    %c0_i32_0 = arith.constant 0 : i32
    %c0_i32_1 = arith.constant 0 : i32
    return %c0_i32, %c0_i32_0 : i32, i32
  }
  func.func @transform_6(%arg0: i32) -> (i32, i32) {
    %c0_i32 = arith.constant 0 : i32
    %c0_i32_0 = arith.constant 0 : i32
    return %c0_i32, %arg0 : i32, i32
  }
}

</mosaic_0001>

<llo_original>
// kernel: tpu_custom_call.1
$region0: #{tpu_custom_call.1}
  #allocation0 [shape = 'u32[]', space=smem, size = 0x4, offset = 0x4, fixed_abs, tag = 'smem constant byte address 0x4 - core index']
  #allocation1 [shape = 'u32[72,128]{1,0:T(1,128)}', space=vmem, size = 0x9000, scoped, tag = 'internal scratch']
  %s0 = inlined_call_operand.vmem [shape: f32[128,16], index: 0, kind: input, shape index: {}]
  %s1 = inlined_call_operand.vmem [shape: f32[32,16], index: 1, kind: input, shape index: {}]
  %s2 = inlined_call_operand.vmem [shape: f32[32,1], index: 2, kind: input, shape index: {}]
  %s3 = inlined_call_operand.vmem [shape: f32[128,32], index: 3, kind: input, shape index: {}]
  %s4 = inlined_call_operand.vmem [shape: f32[128,1], index: 4, kind: input, shape index: {}]
  %s5 = inlined_call_operand.vmem [shape: f32[128,1], index: 5, kind: input, shape index: {}]
  %s6 = inlined_call_operand.hbm [shape: f32[1,128], index: 6, kind: output, shape index: {}]
  %s7 = sld [smem:[#allocation0]]
  $region34: #{tpu_custom_call.1} parent=0
    _
  %s9 = ssub.s32 1, %s7
  %s10 = scalar_select 0, %s9, %s7
  $region1: #{tpu_custom_call.1} parent=0
    #allocation2 [shape = 'u8[512]{0}', space=vmem, size = 0x400, scoped, tag = 'output window, operand 0, single buffered']
    #allocation3 [shape = 's32[1]{0}', space=sflag, size = 0x4, scoped, tag = 'scoped memory for tpu_custom_call.1']
    %11 = vsyncpa [#allocation3], 0
    // Predicated region
    $region2: #{tpu_custom_call.1} parent=1 // pred_check
      _
    $region3: #{tpu_custom_call.1} parent=1 // pred_check_branch
      %13 = sbr.rel (0) target = $region5
    $region4: #{tpu_custom_call.1} parent=1 // pred_region
      _
    $region5: #{tpu_custom_call.1} parent=1 // pred_fallthru
      _
    // Predicated region
    $region6: #{tpu_custom_call.1} parent=1 // pred_check
      _
    $region7: #{tpu_custom_call.1} parent=1 // pred_check_branch
      %15 = sbr.rel (0) target = $region9
    $region8: #{tpu_custom_call.1} parent=1 // pred_region
      _
    $region9: #{tpu_custom_call.1} parent=1 // pred_fallthru
      _
    // Predicated region
    $region10: #{tpu_custom_call.1} parent=1 // pred_check
      _
    $region11: #{tpu_custom_call.1} parent=1 // pred_check_branch
      %17 = sbr.rel (0) target = $region13
    $region12: #{tpu_custom_call.1} parent=1 // pred_region
      _
    $region13: #{tpu_custom_call.1} parent=1 // pred_fallthru
      _
    // Predicated region
    $region14: #{tpu_custom_call.1} parent=1 // pred_check
      _
    $region15: #{tpu_custom_call.1} parent=1 // pred_check_branch
      %19 = sbr.rel (0) target = $region17
    $region16: #{tpu_custom_call.1} parent=1 // pred_region
      _
    $region17: #{tpu_custom_call.1} parent=1 // pred_fallthru
      _
    // Predicated region
    $region18: #{tpu_custom_call.1} parent=1 // pred_check
      _
    $region19: #{tpu_custom_call.1} parent=1 // pred_check_branch
      %21 = sbr.rel (0) target = $region21
    $region20: #{tpu_custom_call.1} parent=1 // pred_region
      _
    $region21: #{tpu_custom_call.1} parent=1 // pred_fallthru
      _
    // Predicated region
    $region22: #{tpu_custom_call.1} parent=1 // pred_check
      _
    $region23: #{tpu_custom_call.1} parent=1 // pred_check_branch
      %23 = sbr.rel (0) target = $region25
    $region24: #{tpu_custom_call.1} parent=1 // pred_region
      _
    $region25: #{tpu_custom_call.1} parent=1 // pred_fallthru
      _
    %v24 = vld [vmem:[%s0] sm:$0xff]
    %v25 = vld [vmem:[%s0 + $0x8] sm:$0xff]
    %v26 = vld [vmem:[%s0 + $0x10] sm:$0xff]
    %v27 = vld [vmem:[%s0 + $0x18] sm:$0xff]
    %v28 = vld [vmem:[%s0 + $0x20] sm:$0xff]
    %v29 = vld [vmem:[%s0 + $0x28] sm:$0xff]
    %v30 = vld [vmem:[%s0 + $0x30] sm:$0xff]
    %v31 = vld [vmem:[%s0 + $0x38] sm:$0xff]
    %v32 = vld [vmem:[%s0 + $0x40] sm:$0xff]
    %v33 = vld [vmem:[%s0 + $0x48] sm:$0xff]
    %v34 = vld [vmem:[%s0 + $0x50] sm:$0xff]
    %v35 = vld [vmem:[%s0 + $0x58] sm:$0xff]
    %v36 = vld [vmem:[%s0 + $0x60] sm:$0xff]
    %v37 = vld [vmem:[%s0 + $0x68] sm:$0xff]
    %v38 = vld [vmem:[%s0 + $0x70] sm:$0xff]
    %v39 = vld [vmem:[%s0 + $0x78] sm:$0xff]
    %v40 = vld [vmem:[%s1] sm:$0xff]
    %v41 = vld [vmem:[%s1 + $0x8] sm:$0xff]
    %v42 = vld [vmem:[%s1 + $0x10] sm:$0xff]
    %v43 = vld [vmem:[%s1 + $0x18] sm:$0xff]
    %v44 = vld [vmem:[%s2] sm:$0xff]
    %v45 = vld [vmem:[%s2 + $0x8] sm:$0xff]
    %v46 = vld [vmem:[%s2 + $0x10] sm:$0xff]
    %v47 = vld [vmem:[%s2 + $0x18] sm:$0xff]
    %49 = vset.pattern.permute.xlu0 0
    %50 = vperm.xlu0 %49, %v44
    %v51 = vpop.permute.xlu0 %50
    %54 = vset.pattern.permute.xlu0 0
    %55 = vperm.xlu0 %54, %v45
    %v56 = vpop.permute.xlu0 %55
    %59 = vset.pattern.permute.xlu0 0
    %60 = vperm.xlu0 %59, %v46
    %v61 = vpop.permute.xlu0 %60
    %64 = vset.pattern.permute.xlu0 0
    %65 = vperm.xlu0 %64, %v47
    %v66 = vpop.permute.xlu0 %65
    %vm68 = vcmask 130048
    %v70 = vsel %vm68, %v40, 0
    %v73 = vsel %vm68, %v41, 0
    %v76 = vsel %vm68, %v42, 0
    %v79 = vsel %vm68, %v43, 0
    %v82 = vsel %vm68, %v24, 0
    %v85 = vsel %vm68, %v25, 0
    %v88 = vsel %vm68, %v26, 0
    %v91 = vsel %vm68, %v27, 0
    %v94 = vsel %vm68, %v28, 0
    %v97 = vsel %vm68, %v29, 0
    %v100 = vsel %vm68, %v30, 0
    %v103 = vsel %vm68, %v31, 0
    %v106 = vsel %vm68, %v32, 0
    %v109 = vsel %vm68, %v33, 0
    %v112 = vsel %vm68, %v34, 0
    %v115 = vsel %vm68, %v35, 0
    %v118 = vsel %vm68, %v36, 0
    %v121 = vsel %vm68, %v37, 0
    %v124 = vsel %vm68, %v38, 0
    %v127 = vsel %vm68, %v39, 0
    %129 = vmatpush.xpose.msra.mxu0 %v127
    %130 = vmatpush.xpose.msra.mxu0 %v124
    %131 = vmatpush.xpose.msra.mxu0 %v121
    %132 = vmatpush.xpose.msra.mxu0 %v118
    %133 = vmatpush.xpose.msra.mxu0 %v115
    %134 = vmatpush.xpose.msra.mxu0 %v112
    %135 = vmatpush.xpose.msra.mxu0 %v109
    %136 = vmatpush.xpose.msra.mxu0 %v106
    %137 = vmatpush.xpose.msra.mxu0 %v103
    %138 = vmatpush.xpose.msra.mxu0 %v100
    %139 = vmatpush.xpose.msra.mxu0 %v97
    %140 = vmatpush.xpose.msra.mxu0 %v94
    %141 = vmatpush.xpose.msra.mxu0 %v91
    %142 = vmatpush.xpose.msra.mxu0 %v88
    %143 = vmatpush.xpose.msra.mxu0 %v85
    %144 = vmatpush.xpose.msra.mxu0 %v82
    %145 = vmatmul.f32.gmra.mxu0 %v70
    %v146 = vpop.f32.mrf.mxu0
    %v147 = vadd.f32 %v51, %v146
    %148 = vmatmul.f32.gmra.mxu0 %v73
    %v149 = vpop.f32.mrf.mxu0
    %v150 = vadd.f32 %v56, %v149
    %151 = vmatmul.f32.gmra.mxu0 %v76
    %v152 = vpop.f32.mrf.mxu0
    %v153 = vadd.f32 %v61, %v152
    %154 = vmatmul.f32.gmra.mxu0 %v79
    %v155 = vpop.f32.mrf.mxu0
    %v156 = vadd.f32 %v66, %v155
    %157 = vdwg.mxu0
    %v158 = vld [vmem:[%s3] sm:$0xff]
    %v159 = vld [vmem:[%s3 + $0x8] sm:$0xff]
    %v160 = vld [vmem:[%s3 + $0x10] sm:$0xff]
    %v161 = vld [vmem:[%s3 + $0x18] sm:$0xff]
    %v162 = vld [vmem:[%s3 + $0x20] sm:$0xff]
    %v163 = vld [vmem:[%s3 + $0x28] sm:$0xff]
    %v164 = vld [vmem:[%s3 + $0x30] sm:$0xff]
    %v165 = vld [vmem:[%s3 + $0x38] sm:$0xff]
    %v166 = vld [vmem:[%s3 + $0x40] sm:$0xff]
    %v167 = vld [vmem:[%s3 + $0x48] sm:$0xff]
    %v168 = vld [vmem:[%s3 + $0x50] sm:$0xff]
    %v169 = vld [vmem:[%s3 + $0x58] sm:$0xff]
    %v170 = vld [vmem:[%s3 + $0x60] sm:$0xff]
    %v171 = vld [vmem:[%s3 + $0x68] sm:$0xff]
    %v172 = vld [vmem:[%s3 + $0x70] sm:$0xff]
    %v173 = vld [vmem:[%s3 + $0x78] sm:$0xff]
    %v174 = vld [vmem:[%s4] sm:$0xff]
    %v175 = vld [vmem:[%s4 + $0x8] sm:$0xff]
    %v176 = vld [vmem:[%s4 + $0x10] sm:$0xff]
    %v177 = vld [vmem:[%s4 + $0x18] sm:$0xff]
    %v178 = vld [vmem:[%s4 + $0x20] sm:$0xff]
    %v179 = vld [vmem:[%s4 + $0x28] sm:$0xff]
    %v180 = vld [vmem:[%s4 + $0x30] sm:$0xff]
    %v181 = vld [vmem:[%s4 + $0x38] sm:$0xff]
    %v182 = vld [vmem:[%s4 + $0x40] sm:$0xff]
    %v183 = vld [vmem:[%s4 + $0x48] sm:$0xff]
    %v184 = vld [vmem:[%s4 + $0x50] sm:$0xff]
    %v185 = vld [vmem:[%s4 + $0x58] sm:$0xff]
    %v186 = vld [vmem:[%s4 + $0x60] sm:$0xff]
    %v187 = vld [vmem:[%s4 + $0x68] sm:$0xff]
    %v188 = vld [vmem:[%s4 + $0x70] sm:$0xff]
    %v189 = vld [vmem:[%s4 + $0x78] sm:$0xff]
    %191 = vset.pattern.permute.xlu0 0
    %192 = vperm.xlu0 %191, %v174
    %v193 = vpop.permute.xlu0 %192
    %196 = vset.pattern.permute.xlu0 0
    %197 = vperm.xlu0 %196, %v175
    %v198 = vpop.permute.xlu0 %197
    %201 = vset.pattern.permute.xlu0 0
    %202 = vperm.xlu0 %201, %v176
    %v203 = vpop.permute.xlu0 %202
    %206 = vset.pattern.permute.xlu0 0
    %207 = vperm.xlu0 %206, %v177
    %v208 = vpop.permute.xlu0 %207
    %211 = vset.pattern.permute.xlu0 0
    %212 = vperm.xlu0 %211, %v178
    %v213 = vpop.permute.xlu0 %212
    %216 = vset.pattern.permute.xlu0 0
    %217 = vperm.xlu0 %216, %v179
    %v218 = vpop.permute.xlu0 %217
    %221 = vset.pattern.permute.xlu0 0
    %222 = vperm.xlu0 %221, %v180
    %v223 = vpop.permute.xlu0 %222
    %226 = vset.pattern.permute.xlu0 0
    %227 = vperm.xlu0 %226, %v181
    %v228 = vpop.permute.xlu0 %227
    %231 = vset.pattern.permute.xlu0 0
    %232 = vperm.xlu0 %231, %v182
    %v233 = vpop.permute.xlu0 %232
    %236 = vset.pattern.permute.xlu0 0
    %237 = vperm.xlu0 %236, %v183
    %v238 = vpop.permute.xlu0 %237
    %241 = vset.pattern.permute.xlu0 0
    %242 = vperm.xlu0 %241, %v184
    %v243 = vpop.permute.xlu0 %242
    %246 = vset.pattern.permute.xlu0 0
    %247 = vperm.xlu0 %246, %v185
    %v248 = vpop.permute.xlu0 %247
    %251 = vset.pattern.permute.xlu0 0
    %252 = vperm.xlu0 %251, %v186
    %v253 = vpop.permute.xlu0 %252
    %256 = vset.pattern.permute.xlu0 0
    %257 = vperm.xlu0 %256, %v187
    %v258 = vpop.permute.xlu0 %257
    %261 = vset.pattern.permute.xlu0 0
    %262 = vperm.xlu0 %261, %v188
    %v263 = vpop.permute.xlu0 %262
    %266 = vset.pattern.permute.xlu0 0
    %267 = vperm.xlu0 %266, %v189
    %v268 = vpop.permute.xlu0 %267
    %vm270 = vcmask 261120
    %v272 = vsel %vm270, %v158, 0
    %v275 = vsel %vm270, %v159, 0
    %v278 = vsel %vm270, %v160, 0
    %v281 = vsel %vm270, %v161, 0
    %v284 = vsel %vm270, %v162, 0
    %v287 = vsel %vm270, %v163, 0
    %v290 = vsel %vm270, %v164, 0
    %v293 = vsel %vm270, %v165, 0
    %v296 = vsel %vm270, %v166, 0
    %v299 = vsel %vm270, %v167, 0
    %v302 = vsel %vm270, %v168, 0
    %v305 = vsel %vm270, %v169, 0
    %v308 = vsel %vm270, %v170, 0
    %v311 = vsel %vm270, %v171, 0
    %v314 = vsel %vm270, %v172, 0
    %v317 = vsel %vm270, %v173, 0
    %319 = vmatpush.msra.mxu0 0.0
    %320 = vmatpush.msra.mxu0 0.0
    %321 = vmatpush.msra.mxu0 0.0
    %322 = vmatpush.msra.mxu0 0.0
    %323 = vmatpush.msra.mxu0 0.0
    %324 = vmatpush.msra.mxu0 0.0
    %325 = vmatpush.msra.mxu0 0.0
    %326 = vmatpush.msra.mxu0 0.0
    %327 = vmatpush.msra.mxu0 0.0
    %328 = vmatpush.msra.mxu0 0.0
    %329 = vmatpush.msra.mxu0 0.0
    %330 = vmatpush.msra.mxu0 0.0
    %331 = vmatpush.msra.mxu0 %v156
    %332 = vmatpush.msra.mxu0 %v153
    %333 = vmatpush.msra.mxu0 %v150
    %334 = vmatpush.msra.mxu0 %v147
    %335 = vmatmul.f32.gmra.mxu0 %v272
    %v336 = vpop.f32.mrf.mxu0
    %v337 = vadd.f32 %v193, %v336
    %338 = vmatmul.f32.gmra.mxu0 %v275
    %v339 = vpop.f32.mrf.mxu0
    %v340 = vadd.f32 %v198, %v339
    %341 = vmatmul.f32.gmra.mxu0 %v278
    %v342 = vpop.f32.mrf.mxu0
    %v343 = vadd.f32 %v203, %v342
    %344 = vmatmul.f32.gmra.mxu0 %v281
    %v345 = vpop.f32.mrf.mxu0
    %v346 = vadd.f32 %v208, %v345
    %347 = vmatmul.f32.gmra.mxu0 %v284
    %v348 = vpop.f32.mrf.mxu0
    %v349 = vadd.f32 %v213, %v348
    %350 = vmatmul.f32.gmra.mxu0 %v287
    %v351 = vpop.f32.mrf.mxu0
    %v352 = vadd.f32 %v218, %v351
    %353 = vmatmul.f32.gmra.mxu0 %v290
    %v354 = vpop.f32.mrf.mxu0
    %v355 = vadd.f32 %v223, %v354
    %356 = vmatmul.f32.gmra.mxu0 %v293
    %v357 = vpop.f32.mrf.mxu0
    %v358 = vadd.f32 %v228, %v357
    %359 = vmatmul.f32.gmra.mxu0 %v296
    %v360 = vpop.f32.mrf.mxu0
    %v361 = vadd.f32 %v233, %v360
    %362 = vmatmul.f32.gmra.mxu0 %v299
    %v363 = vpop.f32.mrf.mxu0
    %v364 = vadd.f32 %v238, %v363
    %365 = vmatmul.f32.gmra.mxu0 %v302
    %v366 = vpop.f32.mrf.mxu0
    %v367 = vadd.f32 %v243, %v366
    %368 = vmatmul.f32.gmra.mxu0 %v305
    %v369 = vpop.f32.mrf.mxu0
    %v370 = vadd.f32 %v248, %v369
    %371 = vmatmul.f32.gmra.mxu0 %v308
    %v372 = vpop.f32.mrf.mxu0
    %v373 = vadd.f32 %v253, %v372
    %374 = vmatmul.f32.gmra.mxu0 %v311
    %v375 = vpop.f32.mrf.mxu0
    %v376 = vadd.f32 %v258, %v375
    %377 = vmatmul.f32.gmra.mxu0 %v314
    %v378 = vpop.f32.mrf.mxu0
    %v379 = vadd.f32 %v263, %v378
    %380 = vmatmul.f32.gmra.mxu0 %v317
    %v381 = vpop.f32.mrf.mxu0
    %v382 = vadd.f32 %v268, %v381
    %383 = vdwg.mxu0
    %v384 = vmax.f32 %v337, 0.0
    %v385 = vmax.f32 %v340, 0.0
    %v386 = vmax.f32 %v343, 0.0
    %v387 = vmax.f32 %v346, 0.0
    %v388 = vmax.f32 %v349, 0.0
    %v389 = vmax.f32 %v352, 0.0
    %v390 = vmax.f32 %v355, 0.0
    %v391 = vmax.f32 %v358, 0.0
    %v392 = vmax.f32 %v361, 0.0
    %v393 = vmax.f32 %v364, 0.0
    %v394 = vmax.f32 %v367, 0.0
    %v395 = vmax.f32 %v370, 0.0
    %v396 = vmax.f32 %v373, 0.0
    %v397 = vmax.f32 %v376, 0.0
    %v398 = vmax.f32 %v379, 0.0
    %v399 = vmax.f32 %v382, 0.0
    %v400 = vld [vmem:[%s5] sm:$0xff]
    %v401 = vld [vmem:[%s5 + $0x8] sm:$0xff]
    %v402 = vld [vmem:[%s5 + $0x10] sm:$0xff]
    %v403 = vld [vmem:[%s5 + $0x18] sm:$0xff]
    %v404 = vld [vmem:[%s5 + $0x20] sm:$0xff]
    %v405 = vld [vmem:[%s5 + $0x28] sm:$0xff]
    %v406 = vld [vmem:[%s5 + $0x30] sm:$0xff]
    %v407 = vld [vmem:[%s5 + $0x38] sm:$0xff]
    %v408 = vld [vmem:[%s5 + $0x40] sm:$0xff]
    %v409 = vld [vmem:[%s5 + $0x48] sm:$0xff]
    %v410 = vld [vmem:[%s5 + $0x50] sm:$0xff]
    %v411 = vld [vmem:[%s5 + $0x58] sm:$0xff]
    %v412 = vld [vmem:[%s5 + $0x60] sm:$0xff]
    %v413 = vld [vmem:[%s5 + $0x68] sm:$0xff]
    %v414 = vld [vmem:[%s5 + $0x70] sm:$0xff]
    %v415 = vld [vmem:[%s5 + $0x78] sm:$0xff]
    %417 = vset.pattern.permute.xlu0 0
    %418 = vperm.xlu0 %417, %v400
    %v419 = vpop.permute.xlu0 %418
    %422 = vset.pattern.permute.xlu0 0
    %423 = vperm.xlu0 %422, %v401
    %v424 = vpop.permute.xlu0 %423
    %427 = vset.pattern.permute.xlu0 0
    %428 = vperm.xlu0 %427, %v402
    %v429 = vpop.permute.xlu0 %428
    %432 = vset.pattern.permute.xlu0 0
    %433 = vperm.xlu0 %432, %v403
    %v434 = vpop.permute.xlu0 %433
    %437 = vset.pattern.permute.xlu0 0
    %438 = vperm.xlu0 %437, %v404
    %v439 = vpop.permute.xlu0 %438
    %442 = vset.pattern.permute.xlu0 0
    %443 = vperm.xlu0 %442, %v405
    %v444 = vpop.permute.xlu0 %443
    %447 = vset.pattern.permute.xlu0 0
    %448 = vperm.xlu0 %447, %v406
    %v449 = vpop.permute.xlu0 %448
    %452 = vset.pattern.permute.xlu0 0
    %453 = vperm.xlu0 %452, %v407
    %v454 = vpop.permute.xlu0 %453
    %457 = vset.pattern.permute.xlu0 0
    %458 = vperm.xlu0 %457, %v408
    %v459 = vpop.permute.xlu0 %458
    %462 = vset.pattern.permute.xlu0 0
    %463 = vperm.xlu0 %462, %v409
    %v464 = vpop.permute.xlu0 %463
    %467 = vset.pattern.permute.xlu0 0
    %468 = vperm.xlu0 %467, %v410
    %v469 = vpop.permute.xlu0 %468
    %472 = vset.pattern.permute.xlu0 0
    %473 = vperm.xlu0 %472, %v411
    %v474 = vpop.permute.xlu0 %473
    %477 = vset.pattern.permute.xlu0 0
    %478 = vperm.xlu0 %477, %v412
    %v479 = vpop.permute.xlu0 %478
    %482 = vset.pattern.permute.xlu0 0
    %483 = vperm.xlu0 %482, %v413
    %v484 = vpop.permute.xlu0 %483
    %487 = vset.pattern.permute.xlu0 0
    %488 = vperm.xlu0 %487, %v414
    %v489 = vpop.permute.xlu0 %488
    %492 = vset.pattern.permute.xlu0 0
    %493 = vperm.xlu0 %492, %v415
    %v494 = vpop.permute.xlu0 %493
    %v496 = vmul.f32 %v384, %v419
    %v497 = vmul.f32 %v385, %v424
    %v498 = vmul.f32 %v386, %v429
    %v499 = vmul.f32 %v387, %v434
    %v500 = vmul.f32 %v388, %v439
    %v501 = vmul.f32 %v389, %v444
    %v502 = vmul.f32 %v390, %v449
    %v503 = vmul.f32 %v391, %v454
    %v504 = vmul.f32 %v392, %v459
    %v505 = vmul.f32 %v393, %v464
    %v506 = vmul.f32 %v394, %v469
    %v507 = vmul.f32 %v395, %v474
    %v508 = vmul.f32 %v396, %v479
    %v509 = vmul.f32 %v397, %v484
    %v510 = vmul.f32 %v398, %v489
    %v511 = vmul.f32 %v399, %v494
    %v512 = vadd.f32 %v496, %v497
    %v513 = vadd.f32 %v512, %v498
    %v514 = vadd.f32 %v513, %v499
    %v515 = vadd.f32 %v514, %v500
    %v516 = vadd.f32 %v515, %v501
    %v517 = vadd.f32 %v516, %v502
    %v518 = vadd.f32 %v517, %v503
    %v519 = vadd.f32 %v518, %v504
    %v520 = vadd.f32 %v519, %v505
    %v521 = vadd.f32 %v520, %v506
    %v522 = vadd.f32 %v521, %v507
    %v523 = vadd.f32 %v522, %v508
    %v524 = vadd.f32 %v523, %v509
    %v525 = vadd.f32 %v524, %v510
    %v526 = vadd.f32 %v525, %v511
    %v527 = vrot.slane %v526, 4
    %v528 = vadd.f32 %v526, %v527
    %v529 = vrot.slane %v528, 2
    %v530 = vadd.f32 %v528, %v529
    %v531 = vrot.slane %v530, 1
    %v532 = vadd.f32 %v530, %v531
    %533 = vst [vmem:[#allocation2] sm:$0x1] %v532
    // Predicated region
    $region26: #{tpu_custom_call.1} parent=1 // pred_check
      _
    $region27: #{tpu_custom_call.1} parent=1 // pred_check_branch
      %535 = sbr.rel (0) target = $region29
    $region28: #{tpu_custom_call.1} parent=1 // pred_region
      %537 = vsyncadd [#allocation3], 0
      %s539 = sshll.u32 [#allocation2], 4
      %s540 = int_to_ptr.vmem [resolvable:$true] %s539
      %s541 = sshll.u32 %s6, 4
      %s542 = int_to_ptr.hbm [resolvable:$true] %s541
      %544 = dma.vmem_to_hbm [thread:$0]  %s540, 16, %s542, [#allocation3]
    $region29: #{tpu_custom_call.1} parent=1 // pred_fallthru
      _
    // Predicated region
    $region30: #{tpu_custom_call.1} parent=1 // pred_check
      _
    $region31: #{tpu_custom_call.1} parent=1 // pred_check_branch
      %546 = sbr.rel (0) target = $region33
    $region32: #{tpu_custom_call.1} parent=1 // pred_region
      %548 = dma.done [#allocation3], 16
    $region33: #{tpu_custom_call.1} parent=1 // pred_fallthru
      _
    %549 = vsyncpa [#allocation3], 1

// kernel: tpu_custom_call.1
$region0: #{tpu_custom_call.1}
  #allocation0 [shape = 'u32[]', space=smem, size = 0x4, offset = 0x4, fixed_abs, tag = 'smem constant byte address 0x4 - core index']
  #allocation1 [shape = 'u32[72,128]{1,0:T(1,128)}', space=vmem, size = 0x9000, scoped, tag = 'internal scratch']
  %s0 = inlined_call_operand.vmem [shape: f32[128,16], index: 0, kind: input, shape index: {}]
  %s1 = inlined_call_operand.vmem [shape: f32[32,16], index: 1, kind: input, shape index: {}]
  %s2 = inlined_call_operand.vmem [shape: f32[32,1], index: 2, kind: input, shape index: {}]
  %s3 = inlined_call_operand.vmem [shape: f32[128,32], index: 3, kind: input, shape index: {}]
  %s4 = inlined_call_operand.vmem [shape: f32[128,1], index: 4, kind: input, shape index: {}]
  %s5 = inlined_call_operand.vmem [shape: f32[128,1], index: 5, kind: input, shape index: {}]
  %s6 = inlined_call_operand.hbm [shape: f32[1,128], index: 6, kind: output, shape index: {}]
  %s7 = sld [smem:[#allocation0]]
  $region34: #{tpu_custom_call.1} parent=0
    _
  %s9 = ssub.s32 1, %s7
  %s10 = scalar_select 0, %s9, %s7
  $region1: #{tpu_custom_call.1} parent=0
    #allocation2 [shape = 'u8[512]{0}', space=vmem, size = 0x400, scoped, tag = 'output window, operand 0, single buffered']
    #allocation3 [shape = 's32[1]{0}', space=sflag, size = 0x4, scoped, tag = 'scoped memory for tpu_custom_call.1']
    %11 = vsyncpa [#allocation3], 0
    // Predicated region
    $region2: #{tpu_custom_call.1} parent=1 // pred_check
      _
    $region3: #{tpu_custom_call.1} parent=1 // pred_check_branch
      %13 = sbr.rel (0) target = $region5
    $region4: #{tpu_custom_call.1} parent=1 // pred_region
      _
    $region5: #{tpu_custom_call.1} parent=1 // pred_fallthru
      _
    // Predicated region
    $region6: #{tpu_custom_call.1} parent=1 // pred_check
      _
    $region7: #{tpu_custom_call.1} parent=1 // pred_check_branch
      %15 = sbr.rel (0) target = $region9
    $region8: #{tpu_custom_call.1} parent=1 // pred_region
      _
    $region9: #{tpu_custom_call.1} parent=1 // pred_fallthru
      _
    // Predicated region
    $region10: #{tpu_custom_call.1} parent=1 // pred_check
      _
    $region11: #{tpu_custom_call.1} parent=1 // pred_check_branch
      %17 = sbr.rel (0) target = $region13
    $region12: #{tpu_custom_call.1} parent=1 // pred_region
      _
    $region13: #{tpu_custom_call.1} parent=1 // pred_fallthru
      _
    // Predicated region
    $region14: #{tpu_custom_call.1} parent=1 // pred_check
      _
    $region15: #{tpu_custom_call.1} parent=1 // pred_check_branch
      %19 = sbr.rel (0) target = $region17
    $region16: #{tpu_custom_call.1} parent=1 // pred_region
      _
    $region17: #{tpu_custom_call.1} parent=1 // pred_fallthru
      _
    // Predicated region
    $region18: #{tpu_custom_call.1} parent=1 // pred_check
      _
    $region19: #{tpu_custom_call.1} parent=1 // pred_check_branch
      %21 = sbr.rel (0) target = $region21
    $region20: #{tpu_custom_call.1} parent=1 // pred_region
      _
    $region21: #{tpu_custom_call.1} parent=1 // pred_fallthru
      _
    // Predicated region
    $region22: #{tpu_custom_call.1} parent=1 // pred_check
      _
    $region23: #{tpu_custom_call.1} parent=1 // pred_check_branch
      %23 = sbr.rel (0) target = $region25
    $region24: #{tpu_custom_call.1} parent=1 // pred_region
      _
    $region25: #{tpu_custom_call.1} parent=1 // pred_fallthru
      _
    %v24 = vld [vmem:[%s0] sm:$0xff]
    %v25 = vld [vmem:[%s0 + $0x8] sm:$0xff]
    %v26 = vld [vmem:[%s0 + $0x10] sm:$0xff]
    %v27 = vld [vmem:[%s0 + $0x18] sm:$0xff]
    %v28 = vld [vmem:[%s0 + $0x20] sm:$0xff]
    %v29 = vld [vmem:[%s0 + $0x28] sm:$0xff]
    %v30 = vld [vmem:[%s0 + $0x30] sm:$0xff]
    %v31 = vld [vmem:[%s0 + $0x38] sm:$0xff]
    %v32 = vld [vmem:[%s0 + $0x40] sm:$0xff]
    %v33 = vld [vmem:[%s0 + $0x48] sm:$0xff]
    %v34 = vld [vmem:[%s0 + $0x50] sm:$0xff]
    %v35 = vld [vmem:[%s0 + $0x58] sm:$0xff]
    %v36 = vld [vmem:[%s0 + $0x60] sm:$0xff]
    %v37 = vld [vmem:[%s0 + $0x68] sm:$0xff]
    %v38 = vld [vmem:[%s0 + $0x70] sm:$0xff]
    %v39 = vld [vmem:[%s0 + $0x78] sm:$0xff]
    %v40 = vld [vmem:[%s1] sm:$0xff]
    %v41 = vld [vmem:[%s1 + $0x8] sm:$0xff]
    %v42 = vld [vmem:[%s1 + $0x10] sm:$0xff]
    %v43 = vld [vmem:[%s1 + $0x18] sm:$0xff]
    %v44 = vld [vmem:[%s2] sm:$0xff]
    %v45 = vld [vmem:[%s2 + $0x8] sm:$0xff]
    %v46 = vld [vmem:[%s2 + $0x10] sm:$0xff]
    %v47 = vld [vmem:[%s2 + $0x18] sm:$0xff]
    %49 = vset.pattern.permute.xlu0 0
    %50 = vperm.xlu0 %49, %v44
    %v51 = vpop.permute.xlu0 %50
    %54 = vset.pattern.permute.xlu0 0
    %55 = vperm.xlu0 %54, %v45
    %v56 = vpop.permute.xlu0 %55
    %59 = vset.pattern.permute.xlu0 0
    %60 = vperm.xlu0 %59, %v46
    %v61 = vpop.permute.xlu0 %60
    %64 = vset.pattern.permute.xlu0 0
    %65 = vperm.xlu0 %64, %v47
    %v66 = vpop.permute.xlu0 %65
    %vm68 = vcmask 130048
    %v70 = vsel %vm68, %v40, 0
    %v73 = vsel %vm68, %v41, 0
    %v76 = vsel %vm68, %v42, 0
    %v79 = vsel %vm68, %v43, 0
    %v82 = vsel %vm68, %v24, 0
    %v85 = vsel %vm68, %v25, 0
    %v88 = vsel %vm68, %v26, 0
    %v91 = vsel %vm68, %v27, 0
    %v94 = vsel %vm68, %v28, 0
    %v97 = vsel %vm68, %v29, 0
    %v100 = vsel %vm68, %v30, 0
    %v103 = vsel %vm68, %v31, 0
    %v106 = vsel %vm68, %v32, 0
    %v109 = vsel %vm68, %v33, 0
    %v112 = vsel %vm68, %v34, 0
    %v115 = vsel %vm68, %v35, 0
    %v118 = vsel %vm68, %v36, 0
    %v121 = vsel %vm68, %v37, 0
    %v124 = vsel %vm68, %v38, 0
    %v127 = vsel %vm68, %v39, 0
    %129 = vmatpush.xpose.msra.mxu0 %v127
    %130 = vmatpush.xpose.msra.mxu0 %v124
    %131 = vmatpush.xpose.msra.mxu0 %v121
    %132 = vmatpush.xpose.msra.mxu0 %v118
    %133 = vmatpush.xpose.msra.mxu0 %v115
    %134 = vmatpush.xpose.msra.mxu0 %v112
    %135 = vmatpush.xpose.msra.mxu0 %v109
    %136 = vmatpush.xpose.msra.mxu0 %v106
    %137 = vmatpush.xpose.msra.mxu0 %v103
    %138 = vmatpush.xpose.msra.mxu0 %v100
    %139 = vmatpush.xpose.msra.mxu0 %v97
    %140 = vmatpush.xpose.msra.mxu0 %v94
    %141 = vmatpush.xpose.msra.mxu0 %v91
    %142 = vmatpush.xpose.msra.mxu0 %v88
    %143 = vmatpush.xpose.msra.mxu0 %v85
    %144 = vmatpush.xpose.msra.mxu0 %v82
    %145 = vmatmul.f32.gmra.mxu0 %v70
    %v146 = vpop.f32.mrf.mxu0
    %v147 = vadd.f32 %v51, %v146
    %148 = vmatmul.f32.gmra.mxu0 %v73
    %v149 = vpop.f32.mrf.mxu0
    %v150 = vadd.f32 %v56, %v149
    %151 = vmatmul.f32.gmra.mxu0 %v76
    %v152 = vpop.f32.mrf.mxu0
    %v153 = vadd.f32 %v61, %v152
    %154 = vmatmul.f32.gmra.mxu0 %v79
    %v155 = vpop.f32.mrf.mxu0
    %v156 = vadd.f32 %v66, %v155
    %157 = vdwg.mxu0
    %v158 = vld [vmem:[%s3] sm:$0xff]
    %v159 = vld [vmem:[%s3 + $0x8] sm:$0xff]
    %v160 = vld [vmem:[%s3 + $0x10] sm:$0xff]
    %v161 = vld [vmem:[%s3 + $0x18] sm:$0xff]
    %v162 = vld [vmem:[%s3 + $0x20] sm:$0xff]
    %v163 = vld [vmem:[%s3 + $0x28] sm:$0xff]
    %v164 = vld [vmem:[%s3 + $0x30] sm:$0xff]
    %v165 = vld [vmem:[%s3 + $0x38] sm:$0xff]
    %v166 = vld [vmem:[%s3 + $0x40] sm:$0xff]
    %v167 = vld [vmem:[%s3 + $0x48] sm:$0xff]
    %v168 = vld [vmem:[%s3 + $0x50] sm:$0xff]
    %v169 = vld [vmem:[%s3 + $0x58] sm:$0xff]
    %v170 = vld [vmem:[%s3 + $0x60] sm:$0xff]
    %v171 = vld [vmem:[%s3 + $0x68] sm:$0xff]
    %v172 = vld [vmem:[%s3 + $0x70] sm:$0xff]
    %v173 = vld [vmem:[%s3 + $0x78] sm:$0xff]
    %v174 = vld [vmem:[%s4] sm:$0xff]
    %v175 = vld [vmem:[%s4 + $0x8] sm:$0xff]
    %v176 = vld [vmem:[%s4 + $0x10] sm:$0xff]
    %v177 = vld [vmem:[%s4 + $0x18] sm:$0xff]
    %v178 = vld [vmem:[%s4 + $0x20] sm:$0xff]
    %v179 = vld [vmem:[%s4 + $0x28] sm:$0xff]
    %v180 = vld [vmem:[%s4 + $0x30] sm:$0xff]
    %v181 = vld [vmem:[%s4 + $0x38] sm:$0xff]
    %v182 = vld [vmem:[%s4 + $0x40] sm:$0xff]
    %v183 = vld [vmem:[%s4 + $0x48] sm:$0xff]
    %v184 = vld [vmem:[%s4 + $0x50] sm:$0xff]
    %v185 = vld [vmem:[%s4 + $0x58] sm:$0xff]
    %v186 = vld [vmem:[%s4 + $0x60] sm:$0xff]
    %v187 = vld [vmem:[%s4 + $0x68] sm:$0xff]
    %v188 = vld [vmem:[%s4 + $0x70] sm:$0xff]
    %v189 = vld [vmem:[%s4 + $0x78] sm:$0xff]
    %191 = vset.pattern.permute.xlu0 0
    %192 = vperm.xlu0 %191, %v174
    %v193 = vpop.permute.xlu0 %192
    %196 = vset.pattern.permute.xlu0 0
    %197 = vperm.xlu0 %196, %v175
    %v198 = vpop.permute.xlu0 %197
    %201 = vset.pattern.permute.xlu0 0
    %202 = vperm.xlu0 %201, %v176
    %v203 = vpop.permute.xlu0 %202
    %206 = vset.pattern.permute.xlu0 0
    %207 = vperm.xlu0 %206, %v177
    %v208 = vpop.permute.xlu0 %207
    %211 = vset.pattern.permute.xlu0 0
    %212 = vperm.xlu0 %211, %v178
    %v213 = vpop.permute.xlu0 %212
    %216 = vset.pattern.permute.xlu0 0
    %217 = vperm.xlu0 %216, %v179
    %v218 = vpop.permute.xlu0 %217
    %221 = vset.pattern.permute.xlu0 0
    %222 = vperm.xlu0 %221, %v180
    %v223 = vpop.permute.xlu0 %222
    %226 = vset.pattern.permute.xlu0 0
    %227 = vperm.xlu0 %226, %v181
    %v228 = vpop.permute.xlu0 %227
    %231 = vset.pattern.permute.xlu0 0
    %232 = vperm.xlu0 %231, %v182
    %v233 = vpop.permute.xlu0 %232
    %236 = vset.pattern.permute.xlu0 0
    %237 = vperm.xlu0 %236, %v183
    %v238 = vpop.permute.xlu0 %237
    %241 = vset.pattern.permute.xlu0 0
    %242 = vperm.xlu0 %241, %v184
    %v243 = vpop.permute.xlu0 %242
    %246 = vset.pattern.permute.xlu0 0
    %247 = vperm.xlu0 %246, %v185
    %v248 = vpop.permute.xlu0 %247
    %251 = vset.pattern.permute.xlu0 0
    %252 = vperm.xlu0 %251, %v186
    %v253 = vpop.permute.xlu0 %252
    %256 = vset.pattern.permute.xlu0 0
    %257 = vperm.xlu0 %256, %v187
    %v258 = vpop.permute.xlu0 %257
    %261 = vset.pattern.permute.xlu0 0
    %262 = vperm.xlu0 %261, %v188
    %v263 = vpop.permute.xlu0 %262
    %266 = vset.pattern.permute.xlu0 0
    %267 = vperm.xlu0 %266, %v189
    %v268 = vpop.permute.xlu0 %267
    %vm270 = vcmask 261120
    %v272 = vsel %vm270, %v158, 0
    %v275 = vsel %vm270, %v159, 0
    %v278 = vsel %vm270, %v160, 0
    %v281 = vsel %vm270, %v161, 0
    %v284 = vsel %vm270, %v162, 0
    %v287 = vsel %vm270, %v163, 0
    %v290 = vsel %vm270, %v164, 0
    %v293 = vsel %vm270, %v165, 0
    %v296 = vsel %vm270, %v166, 0
    %v299 = vsel %vm270, %v167, 0
    %v302 = vsel %vm270, %v168, 0
    %v305 = vsel %vm270, %v169, 0
    %v308 = vsel %vm270, %v170, 0
    %v311 = vsel %vm270, %v171, 0
    %v314 = vsel %vm270, %v172, 0
    %v317 = vsel %vm270, %v173, 0
    %319 = vmatpush.msra.mxu0 0.0
    %320 = vmatpush.msra.mxu0 0.0
    %321 = vmatpush.msra.mxu0 0.0
    %322 = vmatpush.msra.mxu0 0.0
    %323 = vmatpush.msra.mxu0 0.0
    %324 = vmatpush.msra.mxu0 0.0
    %325 = vmatpush.msra.mxu0 0.0
    %326 = vmatpush.msra.mxu0 0.0
    %327 = vmatpush.msra.mxu0 0.0
    %328 = vmatpush.msra.mxu0 0.0
    %329 = vmatpush.msra.mxu0 0.0
    %330 = vmatpush.msra.mxu0 0.0
    %331 = vmatpush.msra.mxu0 %v156
    %332 = vmatpush.msra.mxu0 %v153
    %333 = vmatpush.msra.mxu0 %v150
    %334 = vmatpush.msra.mxu0 %v147
    %335 = vmatmul.f32.gmra.mxu0 %v272
    %v336 = vpop.f32.mrf.mxu0
    %v337 = vadd.f32 %v193, %v336
    %338 = vmatmul.f32.gmra.mxu0 %v275
    %v339 = vpop.f32.mrf.mxu0
    %v340 = vadd.f32 %v198, %v339
    %341 = vmatmul.f32.gmra.mxu0 %v278
    %v342 = vpop.f32.mrf.mxu0
    %v343 = vadd.f32 %v203, %v342
    %344 = vmatmul.f32.gmra.mxu0 %v281
    %v345 = vpop.f32.mrf.mxu0
    %v346 = vadd.f32 %v208, %v345
    %347 = vmatmul.f32.gmra.mxu0 %v284
    %v348 = vpop.f32.mrf.mxu0
    %v349 = vadd.f32 %v213, %v348
    %350 = vmatmul.f32.gmra.mxu0 %v287
    %v351 = vpop.f32.mrf.mxu0
    %v352 = vadd.f32 %v218, %v351
    %353 = vmatmul.f32.gmra.mxu0 %v290
    %v354 = vpop.f32.mrf.mxu0
    %v355 = vadd.f32 %v223, %v354
    %356 = vmatmul.f32.gmra.mxu0 %v293
    %v357 = vpop.f32.mrf.mxu0
    %v358 = vadd.f32 %v228, %v357
    %359 = vmatmul.f32.gmra.mxu0 %v296
    %v360 = vpop.f32.mrf.mxu0
    %v361 = vadd.f32 %v233, %v360
    %362 = vmatmul.f32.gmra.mxu0 %v299
    %v363 = vpop.f32.mrf.mxu0
    %v364 = vadd.f32 %v238, %v363
    %365 = vmatmul.f32.gmra.mxu0 %v302
    %v366 = vpop.f32.mrf.mxu0
    %v367 = vadd.f32 %v243, %v366
    %368 = vmatmul.f32.gmra.mxu0 %v305
    %v369 = vpop.f32.mrf.mxu0
    %v370 = vadd.f32 %v248, %v369
    %371 = vmatmul.f32.gmra.mxu0 %v308
    %v372 = vpop.f32.mrf.mxu0
    %v373 = vadd.f32 %v253, %v372
    %374 = vmatmul.f32.gmra.mxu0 %v311
    %v375 = vpop.f32.mrf.mxu0
    %v376 = vadd.f32 %v258, %v375
    %377 = vmatmul.f32.gmra.mxu0 %v314
    %v378 = vpop.f32.mrf.mxu0
    %v379 = vadd.f32 %v263, %v378
    %380 = vmatmul.f32.gmra.mxu0 %v317
    %v381 = vpop.f32.mrf.mxu0
    %v382 = vadd.f32 %v268, %v381
    %383 = vdwg.mxu0
    %v384 = vmax.f32 %v337, 0.0
    %v385 = vmax.f32 %v340, 0.0
    %v386 = vmax.f32 %v343, 0.0
    %v387 = vmax.f32 %v346, 0.0
    %v388 = vmax.f32 %v349, 0.0
    %v389 = vmax.f32 %v352, 0.0
    %v390 = vmax.f32 %v355, 0.0
    %v391 = vmax.f32 %v358, 0.0
    %v392 = vmax.f32 %v361, 0.0
    %v393 = vmax.f32 %v364, 0.0
    %v394 = vmax.f32 %v367, 0.0
    %v395 = vmax.f32 %v370, 0.0
    %v396 = vmax.f32 %v373, 0.0
    %v397 = vmax.f32 %v376, 0.0
    %v398 = vmax.f32 %v379, 0.0
    %v399 = vmax.f32 %v382, 0.0
    %v400 = vld [vmem:[%s5] sm:$0xff]
    %v401 = vld [vmem:[%s5 + $0x8] sm:$0xff]
    %v402 = vld [vmem:[%s5 + $0x10] sm:$0xff]
    %v403 = vld [vmem:[%s5 + $0x18] sm:$0xff]
    %v404 = vld [vmem:[%s5 + $0x20] sm:$0xff]
    %v405 = vld [vmem:[%s5 + $0x28] sm:$0xff]
    %v406 = vld [vmem:[%s5 + $0x30] sm:$0xff]
    %v407 = vld [vmem:[%s5 + $0x38] sm:$0xff]
    %v408 = vld [vmem:[%s5 + $0x40] sm:$0xff]
    %v409 = vld [vmem:[%s5 + $0x48] sm:$0xff]
    %v410 = vld [vmem:[%s5 + $0x50] sm:$0xff]
    %v411 = vld [vmem:[%s5 + $0x58] sm:$0xff]
    %v412 = vld [vmem:[%s5 + $0x60] sm:$0xff]
    %v413 = vld [vmem:[%s5 + $0x68] sm:$0xff]
    %v414 = vld [vmem:[%s5 + $0x70] sm:$0xff]
    %v415 = vld [vmem:[%s5 + $0x78] sm:$0xff]
    %417 = vset.pattern.permute.xlu0 0
    %418 = vperm.xlu0 %417, %v400
    %v419 = vpop.permute.xlu0 %418
    %422 = vset.pattern.permute.xlu0 0
    %423 = vperm.xlu0 %422, %v401
    %v424 = vpop.permute.xlu0 %423
    %427 = vset.pattern.permute.xlu0 0
    %428 = vperm.xlu0 %427, %v402
    %v429 = vpop.permute.xlu0 %428
    %432 = vset.pattern.permute.xlu0 0
    %433 = vperm.xlu0 %432, %v403
    %v434 = vpop.permute.xlu0 %433
    %437 = vset.pattern.permute.xlu0 0
    %438 = vperm.xlu0 %437, %v404
    %v439 = vpop.permute.xlu0 %438
    %442 = vset.pattern.permute.xlu0 0
    %443 = vperm.xlu0 %442, %v405
    %v444 = vpop.permute.xlu0 %443
    %447 = vset.pattern.permute.xlu0 0
    %448 = vperm.xlu0 %447, %v406
    %v449 = vpop.permute.xlu0 %448
    %452 = vset.pattern.permute.xlu0 0
    %453 = vperm.xlu0 %452, %v407
    %v454 = vpop.permute.xlu0 %453
    %457 = vset.pattern.permute.xlu0 0
    %458 = vperm.xlu0 %457, %v408
    %v459 = vpop.permute.xlu0 %458
    %462 = vset.pattern.permute.xlu0 0
    %463 = vperm.xlu0 %462, %v409
    %v464 = vpop.permute.xlu0 %463
    %467 = vset.pattern.permute.xlu0 0
    %468 = vperm.xlu0 %467, %v410
    %v469 = vpop.permute.xlu0 %468
    %472 = vset.pattern.permute.xlu0 0
    %473 = vperm.xlu0 %472, %v411
    %v474 = vpop.permute.xlu0 %473
    %477 = vset.pattern.permute.xlu0 0
    %478 = vperm.xlu0 %477, %v412
    %v479 = vpop.permute.xlu0 %478
    %482 = vset.pattern.permute.xlu0 0
    %483 = vperm.xlu0 %482, %v413
    %v484 = vpop.permute.xlu0 %483
    %487 = vset.pattern.permute.xlu0 0
    %488 = vperm.xlu0 %487, %v414
    %v489 = vpop.permute.xlu0 %488
    %492 = vset.pattern.permute.xlu0 0
    %493 = vperm.xlu0 %492, %v415
    %v494 = vpop.permute.xlu0 %493
    %v496 = vmul.f32 %v384, %v419
    %v497 = vmul.f32 %v385, %v424
    %v498 = vmul.f32 %v386, %v429
    %v499 = vmul.f32 %v387, %v434
    %v500 = vmul.f32 %v388, %v439
    %v501 = vmul.f32 %v389, %v444
    %v502 = vmul.f32 %v390, %v449
    %v503 = vmul.f32 %v391, %v454
    %v504 = vmul.f32 %v392, %v459
    %v505 = vmul.f32 %v393, %v464
    %v506 = vmul.f32 %v394, %v469
    %v507 = vmul.f32 %v395, %v474
    %v508 = vmul.f32 %v396, %v479
    %v509 = vmul.f32 %v397, %v484
    %v510 = vmul.f32 %v398, %v489
    %v511 = vmul.f32 %v399, %v494
    %v512 = vadd.f32 %v496, %v497
    %v513 = vadd.f32 %v512, %v498
    %v514 = vadd.f32 %v513, %v499
    %v515 = vadd.f32 %v514, %v500
    %v516 = vadd.f32 %v515, %v501
    %v517 = vadd.f32 %v516, %v502
    %v518 = vadd.f32 %v517, %v503
    %v519 = vadd.f32 %v518, %v504
    %v520 = vadd.f32 %v519, %v505
    %v521 = vadd.f32 %v520, %v506
    %v522 = vadd.f32 %v521, %v507
    %v523 = vadd.f32 %v522, %v508
    %v524 = vadd.f32 %v523, %v509
    %v525 = vadd.f32 %v524, %v510
    %v526 = vadd.f32 %v525, %v511
    %v527 = vrot.slane %v526, 4
    %v528 = vadd.f32 %v526, %v527
    %v529 = vrot.slane %v528, 2
    %v530 = vadd.f32 %v528, %v529
    %v531 = vrot.slane %v530, 1
    %v532 = vadd.f32 %v530, %v531
    %533 = vst [vmem:[#allocation2] sm:$0x1] %v532
    // Predicated region
    $region26: #{tpu_custom_call.1} parent=1 // pred_check
      _
    $region27: #{tpu_custom_call.1} parent=1 // pred_check_branch
      %535 = sbr.rel (0) target = $region29
    $region28: #{tpu_custom_call.1} parent=1 // pred_region
      %537 = vsyncadd [#allocation3], 0
      %s539 = sshll.u32 [#allocation2], 4
      %s540 = int_to_ptr.vmem [resolvable:$true] %s539
      %s541 = sshll.u32 %s6, 4
      %s542 = int_to_ptr.hbm [resolvable:$true] %s541
      %544 = dma.vmem_to_hbm [thread:$0]  %s540, 16, %s542, [#allocation3]
    $region29: #{tpu_custom_call.1} parent=1 // pred_fallthru
      _
    // Predicated region
    $region30: #{tpu_custom_call.1} parent=1 // pred_check
      _
    $region31: #{tpu_custom_call.1} parent=1 // pred_check_branch
      %546 = sbr.rel (0) target = $region33
    $region32: #{tpu_custom_call.1} parent=1 // pred_region
      %548 = dma.done [#allocation3], 16
    $region33: #{tpu_custom_call.1} parent=1 // pred_fallthru
      _
    %549 = vsyncpa [#allocation3], 1

</llo_original>
